<compile_context>
chip_gen: v5e
topology: v5e:2x2
jax: 0.10.0
libtpu: 0.0.40
codegen_flags: <defaults>
</compile_context>

<pallas_src>
import jax
import jax.numpy as jnp
from jax.experimental import pallas as pl
from jax.experimental.pallas import tpu as pltpu


def perceptron_kernel(x_ref, w_ref, b_ref, o_ref):
    # x_ref: (TM, D) VMEM, w_ref: (D, 1) VMEM, b_ref: (1, 1) SMEM, o_ref: (TM, 1) VMEM
    acc = jnp.dot(x_ref[...], w_ref[...], preferred_element_type=jnp.float32)
    o_ref[...] = (acc + b_ref[0, 0]).astype(o_ref.dtype)


def perceptron_forward(x, w, b, *, tm=None,
                       target_tile_bytes=8 << 20,
                       vmem_limit_bytes=48 << 20):
    """x: [B, D], w: [D, 1], b: [1, 1] -> [B, 1]  (Linear forward)."""
    B, D = x.shape
    itemsize = jnp.dtype(x.dtype).itemsize

    # Pick a batch tile so one X tile is ~target_tile_bytes (capped at 2048 rows).
    if tm is None:
        rows = max(8, target_tile_bytes // max(1, D * itemsize))
        tm = int(min(2048, (rows // 8) * 8))

    if B <= tm:
        tm = B                 # single tile: block == full array dims is always legal
        b_pad = B
    else:
        tm = max(8, (tm // 8) * 8)          # tiled blocks need sublane-aligned rows
        b_pad = int(pl.cdiv(B, tm)) * tm    # pad ragged batch, slice off afterwards
    x_p = x if b_pad == B else jnp.pad(x, ((0, b_pad - B), (0, 0)))

    # TODO(synk): if D grows so a (tm, D) tile no longer fits VMEM, add a K-reduction
    # grid axis with a VMEM f32 accumulator and pl.when init/finalize (P3 pattern).
    out = pl.pallas_call(
        perceptron_kernel,
        out_shape=jax.ShapeDtypeStruct((b_pad, 1), x.dtype),
        grid_spec=pltpu.PrefetchScalarGridSpec(
            num_scalar_prefetch=0,
            grid=(b_pad // tm,),
            in_specs=[
                pl.BlockSpec((tm, D), lambda i: (i, 0)),             # X row-tile (pipelined)
                pl.BlockSpec((D, 1), lambda i: (0, 0)),              # W stays resident
                pl.BlockSpec(memory_space=pltpu.MemorySpace.SMEM),   # scalar bias in SMEM
            ],
            out_specs=pl.BlockSpec((tm, 1), lambda i: (i, 0)),
        ),
        compiler_params=pltpu.CompilerParams(
            # Batch tiles are independent -> let v7x shard the grid over both TCs.
            dimension_semantics=("parallel",),
            vmem_limit_bytes=vmem_limit_bytes,
        ),
    )(x_p, w, b)
    return out[:B]


def predict(x, w, b):
    # Matches Perceptron.predict: sign of the linear output, flattened, as int.
    z = perceptron_forward(x, w, b).reshape(-1)
    return jnp.sign(z).astype(jnp.int32)


def cost(y, y_hat):
    # Training-time perceptron (hinge-like) loss; plain jnp, not part of the kernel.
    return jnp.maximum(-y * y_hat, 0.0).sum()


if __name__ == "__main__":
    key = jax.random.PRNGKey(0)
    kx, kw, kb, kx2 = jax.random.split(key, 4)

    batch = 8
    input_size = 32

    x = jax.random.normal(kx, (batch, input_size), dtype=jnp.float32)
    # Deterministic synthetic params: Linear(input_size) -> 1 output unit.
    w = jax.random.normal(kw, (input_size, 1), dtype=jnp.float32) * 0.1
    b = jax.random.normal(kb, (1, 1), dtype=jnp.float32) * 0.1

    # Small single-tile path.
    y_hat = perceptron_forward(x, w, b)
    jax.block_until_ready(y_hat)
    ref = x @ w + b
    assert y_hat.shape == (batch, 1)
    assert jnp.allclose(y_hat, ref, atol=1e-5, rtol=1e-5)

    # Exercise the tiled + ragged-batch path (grid > 1, pad-and-slice).
    x2 = jax.random.normal(kx2, (200, input_size), dtype=jnp.float32)
    y2 = perceptron_forward(x2, w, b, tm=128)
    jax.block_until_ready(y2)
    ref2 = x2 @ w + b
    assert y2.shape == (200, 1)
    assert jnp.allclose(y2, ref2, atol=1e-5, rtol=1e-5)

    preds = predict(x, w, b)
    jax.block_until_ready(preds)
    assert preds.shape == (batch,)

    print("KERNEL_OK")
</pallas_src>

<mosaic_0001>
module attributes {stable_mosaic.version = 11 : i64} {
  func.func @perceptron_kernel(%arg0: i32, %arg1: memref<8x32xf32, #tpu.memory_space<vmem>>, %arg2: memref<32x1xf32, #tpu.memory_space<vmem>>, %arg3: memref<1x1xf32, #tpu.memory_space<smem>>, %arg4: memref<8x1xf32, #tpu.memory_space<vmem>>) attributes {dimension_semantics = [#tpu.dimension_semantics<parallel>], iteration_bounds = array<i64: 1>, scalar_prefetch = 0 : i64, scratch_operands = 0 : i64, tpu.core_type = #tpu.core_type<tc>, window_params = [{transform_indices = @transform_0, window_bounds = array<i64: 8, 32>}, {pipeline_mode = #tpu.pipeline_mode<synchronous>, transform_indices = @transform_1, window_bounds = array<i64: 32, 1>}, {transform_indices = @transform_2, window_bounds = array<i64: 1, 1>}, {transform_indices = @transform_3, window_bounds = array<i64: 8, 1>}]} {
    %c0 = arith.constant 0 : index
    %c0_0 = arith.constant 0 : index
    %0 = vector.load %arg1[%c0, %c0_0] : memref<8x32xf32, #tpu.memory_space<vmem>>, vector<8x32xf32>
    %c0_1 = arith.constant 0 : index
    %c0_2 = arith.constant 0 : index
    %1 = vector.load %arg2[%c0_1, %c0_2] : memref<32x1xf32, #tpu.memory_space<vmem>>, vector<32x1xf32>
    %cst = arith.constant dense<0.000000e+00> : vector<8x1xf32>
    %2 = tpu.matmul %0, %1, %cst {dimension_numbers = #tpu.dot_dimension_numbers<[1], [0], [0], [1], [0, 0, 1, 1], [], []>} : vector<8x32xf32>, vector<32x1xf32>, vector<8x1xf32> -> vector<8x1xf32>
    %c0_3 = arith.constant 0 : index
    %c0_4 = arith.constant 0 : index
    %3 = memref.load %arg3[%c0_3, %c0_4] : memref<1x1xf32, #tpu.memory_space<smem>>
    %4 = vector.broadcast %3 : f32 to vector<8x1xf32>
    %5 = arith.addf %2, %4 : vector<8x1xf32>
    %c0_5 = arith.constant 0 : index
    %c0_6 = arith.constant 0 : index
    %6 = vector.load %arg4[%c0_5, %c0_6] : memref<8x1xf32, #tpu.memory_space<vmem>>, vector<8x1xf32>
    tpu.vector_store %arg4[%c0_5, %c0_6], %5 {strides = array<i32>} : memref<8x1xf32, #tpu.memory_space<vmem>>, vector<8x1xf32>,
    return
  }
  func.func @transform_0(%arg0: i32) -> (i32, i32) {
    %c0_i32 = arith.constant 0 : i32
    %c0_i32_0 = arith.constant 0 : i32
    return %arg0, %c0_i32 : i32, i32
  }
  func.func @transform_1(%arg0: i32) -> (i32, i32) {
    %c0_i32 = arith.constant 0 : i32
    %c0_i32_0 = arith.constant 0 : i32
    %c0_i32_1 = arith.constant 0 : i32
    return %c0_i32, %c0_i32_0 : i32, i32
  }
  func.func @transform_2(%arg0: i32) -> (i32, i32) {
    %c0_i32 = arith.constant 0 : i32
    %c0_i32_0 = arith.constant 0 : i32
    %c0_i32_1 = arith.constant 0 : i32
    return %c0_i32, %c0_i32_0 : i32, i32
  }
  func.func @transform_3(%arg0: i32) -> (i32, i32) {
    %c0_i32 = arith.constant 0 : i32
    %c0_i32_0 = arith.constant 0 : i32
    return %arg0, %c0_i32 : i32, i32
  }
}

</mosaic_0001>

<llo_original>
// kernel: tpu_custom_call.1
$region0: #{tpu_custom_call.1}
  #allocation0 [shape = 'u32[]', space=smem, size = 0x4, offset = 0x4, fixed_abs, tag = 'smem constant byte address 0x4 - core index']
  #allocation1 [shape = 'u32[72,128]{1,0:T(1,128)}', space=vmem, size = 0x9000, scoped, tag = 'internal scratch']
  #allocation2 [shape = 'f32[1,1]{1,0:T(1,128)S(6)}', space=smem, size = 0x200, scoped, tag = 'scoped memory for tpu_custom_call.1']
  %s0 = inlined_call_operand.vmem [shape: f32[8,32], index: 0, kind: input, shape index: {}]
  %s1 = inlined_call_operand.vmem [shape: f32[32,1], index: 1, kind: input, shape index: {}]
  %s2 = inlined_call_operand.<no memory space> [shape: f32[1,1], index: 2, kind: input, shape index: {}]
  %s3 = inlined_call_operand.vmem [shape: f32[8,1], index: 3, kind: output, shape index: {}]
  %s4 = sld [smem:[#allocation0]]
  $region22: #{tpu_custom_call.1} parent=0
    _
  %s6 = ssub.s32 1, %s4
  %s7 = scalar_select 0, %s6, %s4
  %8 = sst [smem:[#allocation2]] %s2
  // Predicated region
  $region2: #{tpu_custom_call.1} parent=0 // pred_check
    _
  $region3: #{tpu_custom_call.1} parent=0 // pred_check_branch
    %10 = sbr.rel (0) target = $region5
  $region4: #{tpu_custom_call.1} parent=0 // pred_region
    _
  $region5: #{tpu_custom_call.1} parent=0 // pred_fallthru
    _
  // Predicated region
  $region6: #{tpu_custom_call.1} parent=0 // pred_check
    _
  $region7: #{tpu_custom_call.1} parent=0 // pred_check_branch
    %12 = sbr.rel (0) target = $region9
  $region8: #{tpu_custom_call.1} parent=0 // pred_region
    _
  $region9: #{tpu_custom_call.1} parent=0 // pred_fallthru
    _
  // Predicated region
  $region10: #{tpu_custom_call.1} parent=0 // pred_check
    _
  $region11: #{tpu_custom_call.1} parent=0 // pred_check_branch
    %14 = sbr.rel (0) target = $region13
  $region12: #{tpu_custom_call.1} parent=0 // pred_region
    _
  $region13: #{tpu_custom_call.1} parent=0 // pred_fallthru
    _
  %v15 = vld [vmem:[%s0] sm:$0xff]
  %v16 = vld [vmem:[%s1] sm:$0xff]
  %v17 = vld [vmem:[%s1 + $0x8] sm:$0xff]
  %v18 = vld [vmem:[%s1 + $0x10] sm:$0xff]
  %v19 = vld [vmem:[%s1 + $0x18] sm:$0xff]
  %s20 = sld [smem:[#allocation2]]
  %v21 = vstv %s20
  %vm22 = vcmask 261120
  %v24 = vsel %vm22, %v15, 0
  %26 = vmatpush.msra.mxu0 0.0
  %27 = vmatpush.msra.mxu0 0.0
  %28 = vmatpush.msra.mxu0 0.0
  %29 = vmatpush.msra.mxu0 0.0
  %30 = vmatpush.msra.mxu0 0.0
  %31 = vmatpush.msra.mxu0 0.0
  %32 = vmatpush.msra.mxu0 0.0
  %33 = vmatpush.msra.mxu0 0.0
  %34 = vmatpush.msra.mxu0 0.0
  %35 = vmatpush.msra.mxu0 0.0
  %36 = vmatpush.msra.mxu0 0.0
  %37 = vmatpush.msra.mxu0 0.0
  %38 = vmatpush.msra.mxu0 %v19
  %39 = vmatpush.msra.mxu0 %v18
  %40 = vmatpush.msra.mxu0 %v17
  %41 = vmatpush.msra.mxu0 %v16
  %42 = vmatmul.f32.gmra.mxu0 %v24
  %v43 = vpop.f32.mrf.mxu0
  %v44 = vadd.f32 %v21, %v43
  %45 = vdwg.mxu0
  %vm46 = vcmask 7168
  %47 = vst.msk [vmem:[%s3] sm:$0xff] %vm46, %v44
  // Predicated region
  $region14: #{tpu_custom_call.1} parent=0 // pred_check
    _
  $region15: #{tpu_custom_call.1} parent=0 // pred_check_branch
    %49 = sbr.rel (0) target = $region17
  $region16: #{tpu_custom_call.1} parent=0 // pred_region
    _
  $region17: #{tpu_custom_call.1} parent=0 // pred_fallthru
    _
  // Predicated region
  $region18: #{tpu_custom_call.1} parent=0 // pred_check
    _
  $region19: #{tpu_custom_call.1} parent=0 // pred_check_branch
    %51 = sbr.rel (0) target = $region21
  $region20: #{tpu_custom_call.1} parent=0 // pred_region
    _
  $region21: #{tpu_custom_call.1} parent=0 // pred_fallthru
    _

</llo_original>
